<compile_context>
chip_gen: v6e
topology: v6e:2x2x1
jax: 0.10.0
libtpu: 0.0.40
codegen_flags: <defaults>
</compile_context>

<pallas_src>
import jax
import jax.numpy as jnp
from jax.experimental import pallas as pl
from jax.experimental.pallas import tpu as pltpu


def _minmax_kernel(x_ref, w_ref, b_ref, mn_ref, mx_ref):
    # x_ref: (C, TL); w_ref: (C, C); b_ref: (C, 1); mn/mx: (1, 1) accumulators
    # (one pair per image, accumulated across the spatial grid axis).
    x1 = jnp.dot(w_ref[...], x_ref[...],
                 preferred_element_type=jnp.float32,
                 precision=jax.lax.Precision.HIGHEST) + b_ref[...]
    blk_mn = jnp.min(x1, keepdims=True)      # (1, 1)
    blk_mx = jnp.max(x1, keepdims=True)      # (1, 1)

    l = pl.program_id(1)

    @pl.when(l == 0)
    def _():
        mn_ref[...] = blk_mn
        mx_ref[...] = blk_mx

    @pl.when(l != 0)
    def _():
        mn_ref[...] = jnp.minimum(mn_ref[...], blk_mn)
        mx_ref[...] = jnp.maximum(mx_ref[...], blk_mx)


def _gate_conv_kernel(th_ref, x_ref, w_ref, b_ref, o_ref):
    # Recompute x1 from x, gate it against the x1-space threshold (logit(th)),
    # then apply conv1 again.  No transcendentals in the hot loop.
    w = w_ref[...]
    b = b_ref[...]
    th_x1 = th_ref[0, 0]
    x1 = jnp.dot(w, x_ref[...], preferred_element_type=jnp.float32,
                 precision=jax.lax.Precision.HIGHEST) + b
    # torch: out = x1 + where(sigmoid(x1) > th, 1, 0) * x1
    gated = jnp.where(x1 > th_x1, x1 + x1, x1)
    o_ref[...] = jnp.dot(w, gated, preferred_element_type=jnp.float32,
                         precision=jax.lax.Precision.HIGHEST) + b


def _pick_tile(hw, c, n, *, block_budget=2 << 20, min_block=512 << 10,
               min_steps=8):
    """Largest multiple-of-128 divisor of hw whose f32 payload (c*tl*4 B) fits
    the per-block budget; then shrink (if possible) so the grid has at least
    `min_steps` steps for megacore, keeping blocks >= min_block."""
    assert hw % 128 == 0
    m = hw // 128
    bytes_per_128 = 4 * c * 128
    cap = max(1, block_budget // bytes_per_128)
    divs = [d for d in range(1, m + 1) if m % d == 0]
    fitting = [d for d in divs if d <= cap]
    d = max(fitting) if fitting else 1
    while n * (m // d) < min_steps:
        smaller = [e for e in divs if e < d and e * bytes_per_128 >= min_block]
        if not smaller:
            break
        d = max(smaller)
    return d * 128


def gfn_forward(x, w, b, thed=0.8, block_budget=2 << 20):
    """x: (N, C, H, W) f32; w: (C, C, 1, 1); b: (C,). Returns (N, C, H, W)."""
    N, C, H, W = x.shape
    HW = H * W

    xcm = x.reshape(N, C, HW)                     # channel-major view (free)
    # Edge-pad the spatial axis to a multiple of 128 (replicated values leave
    # the min/max of x1 unchanged); slice the result back at the end.
    hw_pad = ((HW + 127) // 128) * 128
    if hw_pad != HW:
        xcm = jnp.pad(xcm, ((0, 0), (0, 0), (0, hw_pad - HW)), mode="edge")

    tl = _pick_tile(hw_pad, C, N, block_budget=block_budget)
    gl = hw_pad // tl
    grid = (N, gl)
    M = N * hw_pad

    wm = w.reshape(C, C)                          # y[o,s] = sum_c W[o,c] x[c,s]
    bb = b.reshape(C, 1)

    # VMEM budget: double-buffered x/out blocks (4x) + pass-2 f32 temporaries
    # x1/gated (2x) + resident W/b, plus margin.  Explicit limit, capped at
    # 48 MiB so the same value is safe on v7x (64 MiB physical) and raises the
    # 16 MiB v5e default.
    need = 4 * (6 * C * tl + 2 * C * C + 2 * C) + (2 << 20)
    vmem_limit = int(min(max(need, 32 << 20), 48 << 20))

    cparams_p1 = pltpu.CompilerParams(
        dimension_semantics=("parallel", "arbitrary"),   # l is a reduction
        vmem_limit_bytes=vmem_limit)
    cparams_p2 = pltpu.CompilerParams(
        dimension_semantics=("parallel", "parallel"),
        vmem_limit_bytes=vmem_limit)

    cost1 = pl.CostEstimate(
        flops=2 * M * C * C, transcendentals=0,
        bytes_accessed=4 * (M * C + C * C + C + 2 * N))
    cost2 = pl.CostEstimate(
        flops=4 * M * C * C, transcendentals=0,
        bytes_accessed=4 * (2 * M * C + C * C + C + 1))

    # Pass 1: per-image min/max of x1 = conv1(x).  x1 never touches HBM.
    mn_p, mx_p = pl.pallas_call(
        _minmax_kernel,
        out_shape=(jax.ShapeDtypeStruct((N, 1, 1), jnp.float32),
                   jax.ShapeDtypeStruct((N, 1, 1), jnp.float32)),
        grid=grid,
        in_specs=[
            pl.BlockSpec((None, C, tl), lambda n, l: (n, 0, l)),
            pl.BlockSpec((C, C), lambda n, l: (0, 0)),
            pl.BlockSpec((C, 1), lambda n, l: (0, 0)),
        ],
        out_specs=(
            pl.BlockSpec((None, 1, 1), lambda n, l: (n, 0, 0)),
            pl.BlockSpec((None, 1, 1), lambda n, l: (n, 0, 0)),
        ),
        compiler_params=cparams_p1,
        cost_estimate=cost1,
    )(xcm, wm, bb)

    # Sigmoid is strictly monotone: min/max(sigmoid(x1)) = sigmoid(min/max(x1)).
    x1_min = jnp.min(mn_p)
    x1_max = jnp.max(mx_p)
    x2_min = jax.nn.sigmoid(x1_min)
    x2_max = jax.nn.sigmoid(x1_max)
    th = thed * (1.0 - x2_min / x2_max)
    # Map threshold into x1 space:  sigmoid(x1) > th  <=>  x1 > logit(th),
    # with guards for th <= 0 (always gate) / th >= 1 (never gate).
    th_c = jnp.clip(th, jnp.float32(1e-30), jnp.float32(1.0 - 1e-7))
    logit = jnp.log(th_c) - jnp.log1p(-th_c)
    th_x1 = jnp.where(th <= 0.0, -jnp.inf,
                      jnp.where(th >= 1.0, jnp.inf, logit))
    th_x1 = th_x1.astype(jnp.float32).reshape(1, 1)

    # Pass 2: recompute x1, gate, second conv — fully fused, one read of x and
    # one write of the output.
    out = pl.pallas_call(
        _gate_conv_kernel,
        out_shape=jax.ShapeDtypeStruct((N, C, hw_pad), jnp.float32),
        grid=grid,
        in_specs=[
            pl.BlockSpec(memory_space=pltpu.MemorySpace.SMEM),   # th scalar
            pl.BlockSpec((None, C, tl), lambda n, l: (n, 0, l)),
            pl.BlockSpec((C, C), lambda n, l: (0, 0)),
            pl.BlockSpec((C, 1), lambda n, l: (0, 0)),
        ],
        out_specs=pl.BlockSpec((None, C, tl), lambda n, l: (n, 0, l)),
        compiler_params=cparams_p2,
        cost_estimate=cost2,
    )(th_x1, xcm, wm, bb)

    if hw_pad != HW:
        out = out[:, :, :HW]
    return out.reshape(N, C, H, W)


def gfn_ref(x, w, b, thed=0.8):
    """Pure-JAX reference reproducing the PyTorch forward (NCHW)."""
    C = x.shape[1]
    wm = w.reshape(C, C)

    def conv(z):
        return jnp.einsum('nchw,oc->nohw', z, wm,
                          precision=jax.lax.Precision.HIGHEST) \
               + b.reshape(1, C, 1, 1)

    x1 = conv(x)
    x2 = jax.nn.sigmoid(x1)
    th = thed * (1.0 - jnp.min(x2) / jnp.max(x2))
    x3 = jnp.where(x2 > th, 1.0, 0.0)
    out = x1 + x3 * x1
    return conv(out)


if __name__ == "__main__":
    key = jax.random.PRNGKey(0)
    kx, kw, kb = jax.random.split(key, 3)

    N, C, H, W = 2, 4, 16, 16
    x = jax.random.normal(kx, (N, C, H, W), jnp.float32)

    # Deterministic Conv2d(dim, dim, 1) parameters (uniform in +/- 1/sqrt(fan_in))
    bound = 1.0 / (C ** 0.5)
    w = jax.random.uniform(kw, (C, C, 1, 1), jnp.float32, -bound, bound)
    b = jax.random.uniform(kb, (C,), jnp.float32, -bound, bound)

    out = gfn_forward(x, w, b, thed=0.8)
    out = jax.block_until_ready(out)

    ref = gfn_ref(x, w, b, thed=0.8)
    assert out.shape == (N, C, H, W)
    err = float(jnp.max(jnp.abs(out - ref)))
    assert jnp.allclose(out, ref, atol=1e-4, rtol=1e-4), err
    print("KERNEL_OK")
</pallas_src>

<mosaic_0001>
module attributes {stable_mosaic.version = 11 : i64} {
  func.func @_minmax_kernel(%arg0: i32, %arg1: i32, %arg2: memref<1x4x256xf32, #tpu.memory_space<vmem>>, %arg3: memref<4x4xf32, #tpu.memory_space<vmem>>, %arg4: memref<4x1xf32, #tpu.memory_space<vmem>>, %arg5: memref<1x1x1xf32, #tpu.memory_space<vmem>>, %arg6: memref<1x1x1xf32, #tpu.memory_space<vmem>>) attributes {dimension_semantics = [#tpu.dimension_semantics<parallel>, #tpu.dimension_semantics<arbitrary>], iteration_bounds = array<i64: 2, 1>, scalar_prefetch = 0 : i64, scratch_operands = 0 : i64, tpu.core_type = #tpu.core_type<tc>, window_params = [{transform_indices = @transform_0, window_bounds = array<i64: 1, 4, 256>}, {pipeline_mode = #tpu.pipeline_mode<synchronous>, transform_indices = @transform_1, window_bounds = array<i64: 4, 4>}, {pipeline_mode = #tpu.pipeline_mode<synchronous>, transform_indices = @transform_2, window_bounds = array<i64: 4, 1>}, {transform_indices = @transform_3, window_bounds = array<i64: 1, 1, 1>}, {transform_indices = @transform_4, window_bounds = array<i64: 1, 1, 1>}]} {
    %c0 = arith.constant 0 : index
    %c0_0 = arith.constant 0 : index
    %0 = vector.load %arg3[%c0, %c0_0] : memref<4x4xf32, #tpu.memory_space<vmem>>, vector<4x4xf32>
    %c0_1 = arith.constant 0 : index
    %c0_2 = arith.constant 0 : index
    %c0_3 = arith.constant 0 : index
    %1 = vector.load %arg2[%c0_1, %c0_2, %c0_3] : memref<1x4x256xf32, #tpu.memory_space<vmem>>, vector<1x4x256xf32>
    %2 = vector.shape_cast %1 : vector<1x4x256xf32> to vector<4x256xf32>
    %cst = arith.constant dense<0.000000e+00> : vector<4x256xf32>
    %3 = tpu.matmul %0, %2, %cst {dimension_numbers = #tpu.dot_dimension_numbers<[1], [0], [0], [1], [0, 0, 1, 1], [], []>, precision = #tpu.contract_precision<fp32>} : vector<4x4xf32>, vector<4x256xf32>, vector<4x256xf32> -> vector<4x256xf32>
    %c0_4 = arith.constant 0 : index
    %c0_5 = arith.constant 0 : index
    %4 = vector.load %arg4[%c0_4, %c0_5] : memref<4x1xf32, #tpu.memory_space<vmem>>, vector<4x1xf32>
    %5 = vector.broadcast %4 : vector<4x1xf32> to vector<4x256xf32>
    %6 = arith.addf %3, %5 : vector<4x256xf32>
    %7 = vector.shape_cast %6 : vector<4x256xf32> to vector<1x4x256xf32>
    %cst_6 = arith.constant dense<0x7F800000> : vector<1xf32>
    %8 = vector.multi_reduction <minimumf>, %7, %cst_6 [1, 2] : vector<1x4x256xf32> to vector<1xf32>
    %9 = vector.shape_cast %8 : vector<1xf32> to vector<1x1x1xf32>
    %10 = vector.extract %9[0, 0, 0] : f32 from vector<1x1x1xf32>
    %11 = vector.broadcast %10 : f32 to vector<1x1xf32>
    %12 = vector.shape_cast %6 : vector<4x256xf32> to vector<1x4x256xf32>
    %cst_7 = arith.constant dense<0xFF800000> : vector<1xf32>
    %13 = vector.multi_reduction <maximumf>, %12, %cst_7 [1, 2] : vector<1x4x256xf32> to vector<1xf32>
    %14 = vector.shape_cast %13 : vector<1xf32> to vector<1x1x1xf32>
    %15 = vector.extract %14[0, 0, 0] : f32 from vector<1x1x1xf32>
    %16 = vector.broadcast %15 : f32 to vector<1x1xf32>
    %c0_i32 = arith.constant 0 : i32
    %17 = arith.cmpi eq, %arg1, %c0_i32 : i32
    %18 = arith.extui %17 : i1 to i32
    %c0_i32_8 = arith.constant 0 : i32
    %19 = arith.cmpi ne, %18, %c0_i32_8 : i32
    scf.if %19 {
      %c0_11 = arith.constant 0 : index
      %c0_12 = arith.constant 0 : index
      %c0_13 = arith.constant 0 : index
      %23 = vector.load %arg5[%c0_11, %c0_12, %c0_13] : memref<1x1x1xf32, #tpu.memory_space<vmem>>, vector<1x1x1xf32>
      %24 = vector.shape_cast %23 : vector<1x1x1xf32> to vector<1x1xf32>
      %25 = vector.shape_cast %11 : vector<1x1xf32> to vector<1x1x1xf32>
      tpu.vector_store %arg5[%c0_11, %c0_12, %c0_13], %25 {strides = array<i32>} : memref<1x1x1xf32, #tpu.memory_space<vmem>>, vector<1x1x1xf32>,
      %c0_14 = arith.constant 0 : index
      %c0_15 = arith.constant 0 : index
      %c0_16 = arith.constant 0 : index
      %26 = vector.load %arg6[%c0_14, %c0_15, %c0_16] : memref<1x1x1xf32, #tpu.memory_space<vmem>>, vector<1x1x1xf32>
      %27 = vector.shape_cast %26 : vector<1x1x1xf32> to vector<1x1xf32>
      %28 = vector.shape_cast %16 : vector<1x1xf32> to vector<1x1x1xf32>
      tpu.vector_store %arg6[%c0_14, %c0_15, %c0_16], %28 {strides = array<i32>} : memref<1x1x1xf32, #tpu.memory_space<vmem>>, vector<1x1x1xf32>,
    } else {
    }
    %c0_i32_9 = arith.constant 0 : i32
    %20 = arith.cmpi ne, %arg1, %c0_i32_9 : i32
    %21 = arith.extui %20 : i1 to i32
    %c0_i32_10 = arith.constant 0 : i32
    %22 = arith.cmpi ne, %21, %c0_i32_10 : i32
    scf.if %22 {
      %c0_11 = arith.constant 0 : index
      %c0_12 = arith.constant 0 : index
      %c0_13 = arith.constant 0 : index
      %23 = vector.load %arg5[%c0_11, %c0_12, %c0_13] : memref<1x1x1xf32, #tpu.memory_space<vmem>>, vector<1x1x1xf32>
      %24 = vector.shape_cast %23 : vector<1x1x1xf32> to vector<1x1xf32>
      %25 = arith.minimumf %24, %11 : vector<1x1xf32>
      %c0_14 = arith.constant 0 : index
      %c0_15 = arith.constant 0 : index
      %c0_16 = arith.constant 0 : index
      %26 = vector.load %arg5[%c0_14, %c0_15, %c0_16] : memref<1x1x1xf32, #tpu.memory_space<vmem>>, vector<1x1x1xf32>
      %27 = vector.shape_cast %26 : vector<1x1x1xf32> to vector<1x1xf32>
      %28 = vector.shape_cast %25 : vector<1x1xf32> to vector<1x1x1xf32>
      tpu.vector_store %arg5[%c0_14, %c0_15, %c0_16], %28 {strides = array<i32>} : memref<1x1x1xf32, #tpu.memory_space<vmem>>, vector<1x1x1xf32>,
      %c0_17 = arith.constant 0 : index
      %c0_18 = arith.constant 0 : index
      %c0_19 = arith.constant 0 : index
      %29 = vector.load %arg6[%c0_17, %c0_18, %c0_19] : memref<1x1x1xf32, #tpu.memory_space<vmem>>, vector<1x1x1xf32>
      %30 = vector.shape_cast %29 : vector<1x1x1xf32> to vector<1x1xf32>
      %31 = arith.maximumf %30, %16 : vector<1x1xf32>
      %c0_20 = arith.constant 0 : index
      %c0_21 = arith.constant 0 : index
      %c0_22 = arith.constant 0 : index
      %32 = vector.load %arg6[%c0_20, %c0_21, %c0_22] : memref<1x1x1xf32, #tpu.memory_space<vmem>>, vector<1x1x1xf32>
      %33 = vector.shape_cast %32 : vector<1x1x1xf32> to vector<1x1xf32>
      %34 = vector.shape_cast %31 : vector<1x1xf32> to vector<1x1x1xf32>
      tpu.vector_store %arg6[%c0_20, %c0_21, %c0_22], %34 {strides = array<i32>} : memref<1x1x1xf32, #tpu.memory_space<vmem>>, vector<1x1x1xf32>,
    } else {
    }
    return
  }
  func.func @transform_0(%arg0: i32, %arg1: i32) -> (i32, i32, i32) {
    %c0_i32 = arith.constant 0 : i32
    %c0_i32_0 = arith.constant 0 : i32
    return %arg0, %c0_i32, %arg1 : i32, i32, i32
  }
  func.func @transform_1(%arg0: i32, %arg1: i32) -> (i32, i32) {
    %c0_i32 = arith.constant 0 : i32
    %c0_i32_0 = arith.constant 0 : i32
    %c0_i32_1 = arith.constant 0 : i32
    return %c0_i32, %c0_i32_0 : i32, i32
  }
  func.func @transform_2(%arg0: i32, %arg1: i32) -> (i32, i32) {
    %c0_i32 = arith.constant 0 : i32
    %c0_i32_0 = arith.constant 0 : i32
    %c0_i32_1 = arith.constant 0 : i32
    return %c0_i32, %c0_i32_0 : i32, i32
  }
  func.func @transform_3(%arg0: i32, %arg1: i32) -> (i32, i32, i32) {
    %c0_i32 = arith.constant 0 : i32
    %c0_i32_0 = arith.constant 0 : i32
    %c0_i32_1 = arith.constant 0 : i32
    return %arg0, %c0_i32, %c0_i32_0 : i32, i32, i32
  }
  func.func @transform_4(%arg0: i32, %arg1: i32) -> (i32, i32, i32) {
    %c0_i32 = arith.constant 0 : i32
    %c0_i32_0 = arith.constant 0 : i32
    %c0_i32_1 = arith.constant 0 : i32
    return %arg0, %c0_i32, %c0_i32_0 : i32, i32, i32
  }
}

</mosaic_0001>

<llo_original>
// kernel: tpu_custom_call.1
$region0: #{tpu_custom_call.1}
  #allocation0 [shape = 'u32[]', space=smem, size = 0x4, offset = 0x4, fixed_abs, tag = 'smem constant byte address 0x4 - core index']
  #allocation1 [shape = 'u32[144,128]{1,0:T(1,128)}', space=vmem, size = 0x12000, scoped, tag = 'internal scratch']
  %s0 = inlined_call_operand.hbm [shape: f32[2,4,256], index: 0, kind: input, shape index: {}]
  %s1 = inlined_call_operand.vmem [shape: f32[4,4], index: 1, kind: input, shape index: {}]
  %s2 = inlined_call_operand.vmem [shape: f32[4,1], index: 2, kind: input, shape index: {}]
  %s3 = inlined_call_operand.vmem [shape: f32[2,1,1], index: 3, kind: output, shape index: {0}]
  %s4 = inlined_call_operand.vmem [shape: f32[2,1,1], index: 4, kind: output, shape index: {1}]
  %5 = xla_tuple %s3, %s4
  %s6 = sld [smem:[#allocation0]]
  $region65: #{tpu_custom_call.1} parent=0
    _
  %s8 = ssub.s32 1, %s6
  %s9 = scalar_select 0, %s8, %s6
  $region1: #{tpu_custom_call.1} parent=0
    #allocation2 [shape = 'u8[8192]{0}', space=vmem, size = 0x2000, scoped, tag = 'input window, operand 0']
    #allocation3 [shape = 's32[2]{0}', space=sflag, size = 0x8, scoped, tag = 'scoped memory for tpu_custom_call.1']
    %10 = vsyncpa [#allocation3], 0
    %s11 = scalar_lea.sflag [#allocation3], 1
    %12 = vsyncpa %s11, 0
    loop: start=0, step=1, limit=4
    $region2: #{tpu_custom_call.1} parent=1 // loop_pre_header
      _
    $region3: #{tpu_custom_call.1} parent=1 // loop_header
      %s14 = sphi 0, %s18
      %p15 = scmp.ge.s32.totalorder %s14, 4
      %s21 = sphi 0, %s33
      %s22 = sphi 0, %s29
      %s23 = sphi 0, %s21
      %s24 = sphi 0, %s22
      %s25 = sphi 0, %s23
      %s26 = sphi 0, %s24
      %s38 = sphi 0, %s40
      %s41 = sphi 0, %s38
      %s42 = sphi 0, %s41
      %s58 = sphi 0, %s42
      %s62 = sphi 0, %s62
      %s64 = sphi 0, %s62
      %s65 = sphi 0, %s64
      %s79 = sphi 0, %s65
      %s83 = sphi 0, %s83
      %s85 = sphi 0, %s83
      %s86 = sphi 0, %s85
      %s100 = sphi 0, %s86
      %s106 = sphi 0, %s108
      %s109 = sphi 0, %s106
      %s110 = sphi 0, %s109
      %s126 = sphi 0, %s110
      %s132 = sphi 0, %s134
      %s135 = sphi 0, %s132
      %s136 = sphi 0, %s135
      %s152 = sphi 0, %s136
    $region4: #{tpu_custom_call.1} parent=1 // loop_header_branch
      %17 = sbr.rel (%p15) target = $region8
    $region5: #{tpu_custom_call.1} parent=1 // loop_body
      %s19 = ssub.s32 %s14, 1
      %s20 = ssub.s32 %s14, 2
      %s27 = sadd.s32 1, %s22
      %p28 = scmp.ge.s32.totalorder %s27, 1
      %s29 = scalar_select %p28, 0, %s27
      %s30 = sadd.s32 1, %s21
      %s31 = scalar_select %p28, %s30, %s21
      %p32 = scmp.ge.s32.totalorder %s31, 2
      %s33 = scalar_select %p32, 0, %s31
      %s34 = ssub.s32 %s21, %s33
      %s35 = ssub.s32 %s22, %s29
      %s36 = sor.u32 %s34, %s35
      %p37 = scmp.eq.s32.totalorder %s36, 0
      %s39 = sadd.s32 %s38, 1
      %s40 = scalar_select %p37, %s38, %s39
      %p43 = pneg %p37
      %p44 = scmp.eq.s32.totalorder %s14, 1
      %p45 = por %p43, %p44
      %p46 = scmp.ne.s32.totalorder %s38, %s41
      %p47 = scmp.eq.s32.totalorder %s14, 0
      %p48 = por %p46, %p47
      %p49 = scmp.ne.s32.totalorder %s38, %s41
      %p50 = scmp.eq.s32.totalorder %s19, 1
      %p51 = por %p49, %p50
      %p52 = scmp.ne.s32.totalorder %s41, %s42
      %p53 = scmp.eq.s32.totalorder %s19, 0
      %p54 = por %p52, %p53
      %p55 = scmp.ne.s32.totalorder %s41, %s42
      %p56 = scmp.eq.s32.totalorder %s20, 1
      %p57 = por %p55, %p56
      %p59 = scmp.ne.s32.totalorder %s42, %s58
      %p60 = scmp.eq.s32.totalorder %s20, 0
      %p61 = por %p59, %p60
      %s63 = sadd.s32 %s62, 1
      %p66 = scmp.eq.s32.totalorder %s14, 1
      %p67 = scmp.ne.s32.totalorder %s62, %s64
      %p68 = scmp.eq.s32.totalorder %s14, 0
      %p69 = por %p67, %p68
      %p70 = scmp.ne.s32.totalorder %s62, %s64
      %p71 = scmp.eq.s32.totalorder %s19, 1
      %p72 = por %p70, %p71
      %p73 = scmp.ne.s32.totalorder %s64, %s65
      %p74 = scmp.eq.s32.totalorder %s19, 0
      %p75 = por %p73, %p74
      %p76 = scmp.ne.s32.totalorder %s64, %s65
      %p77 = scmp.eq.s32.totalorder %s20, 1
      %p78 = por %p76, %p77
      %p80 = scmp.ne.s32.totalorder %s65, %s79
      %p81 = scmp.eq.s32.totalorder %s20, 0
      %p82 = por %p80, %p81
      %s84 = sadd.s32 %s83, 1
      %p87 = scmp.eq.s32.totalorder %s14, 1
      %p88 = scmp.ne.s32.totalorder %s83, %s85
      %p89 = scmp.eq.s32.totalorder %s14, 0
      %p90 = por %p88, %p89
      %p91 = scmp.ne.s32.totalorder %s83, %s85
      %p92 = scmp.eq.s32.totalorder %s19, 1
      %p93 = por %p91, %p92
      %p94 = scmp.ne.s32.totalorder %s85, %s86
      %p95 = scmp.eq.s32.totalorder %s19, 0
      %p96 = por %p94, %p95
      %p97 = scmp.ne.s32.totalorder %s85, %s86
      %p98 = scmp.eq.s32.totalorder %s20, 1
      %p99 = por %p97, %p98
      %p101 = scmp.ne.s32.totalorder %s86, %s100
      %p102 = scmp.eq.s32.totalorder %s20, 0
      %p103 = por %p101, %p102
      %s104 = ssub.s32 %s21, %s33
      %p105 = scmp.eq.s32.totalorder %s104, 0
      %s107 = sadd.s32 %s106, 1
      %s108 = scalar_select %p105, %s106, %s107
      %p111 = pneg %p105
      %p112 = scmp.eq.s32.totalorder %s14, 1
      %p113 = por %p111, %p112
      %p114 = scmp.ne.s32.totalorder %s106, %s109
      %p115 = scmp.eq.s32.totalorder %s14, 0
      %p116 = por %p114, %p115
      %p117 = scmp.ne.s32.totalorder %s106, %s109
      %p118 = scmp.eq.s32.totalorder %s19, 1
      %p119 = por %p117, %p118
      %p120 = scmp.ne.s32.totalorder %s109, %s110
      %p121 = scmp.eq.s32.totalorder %s19, 0
      %p122 = por %p120, %p121
      %p123 = scmp.ne.s32.totalorder %s109, %s110
      %p124 = scmp.eq.s32.totalorder %s20, 1
      %p125 = por %p123, %p124
      %p127 = scmp.ne.s32.totalorder %s110, %s126
      %p128 = scmp.eq.s32.totalorder %s20, 0
      %p129 = por %p127, %p128
      %s130 = ssub.s32 %s21, %s33
      %p131 = scmp.eq.s32.totalorder %s130, 0
      %s133 = sadd.s32 %s132, 1
      %s134 = scalar_select %p131, %s132, %s133
      %p137 = pneg %p131
      %p138 = scmp.eq.s32.totalorder %s14, 1
      %p139 = por %p137, %p138
      %p140 = scmp.ne.s32.totalorder %s132, %s135
      %p141 = scmp.eq.s32.totalorder %s14, 0
      %p142 = por %p140, %p141
      %p143 = scmp.ne.s32.totalorder %s132, %s135
      %p144 = scmp.eq.s32.totalorder %s19, 1
      %p145 = por %p143, %p144
      %p146 = scmp.ne.s32.totalorder %s135, %s136
      %p147 = scmp.eq.s32.totalorder %s19, 0
      %p148 = por %p146, %p147
      %p149 = scmp.ne.s32.totalorder %s135, %s136
      %p150 = scmp.eq.s32.totalorder %s20, 1
      %p151 = por %p149, %p150
      %p153 = scmp.ne.s32.totalorder %s136, %s152
      %p154 = scmp.eq.s32.totalorder %s20, 0
      %p155 = por %p153, %p154
      %p156 = scmp.le.s32.totalorder 1, %s14
      %p157 = scmp.lt.s32.totalorder %s14, 3
      %p158 = pnand %p156, %p157
      %p159 = pneg %p158
      // Predicated region
      $region9: #{tpu_custom_call.1} parent=5 // pred_check
        _
      $region10: #{tpu_custom_call.1} parent=5 // pred_check_branch
        %161 = sbr.rel (%p158) target = $region12
      $region11: #{tpu_custom_call.1} parent=5 // pred_region
        %s162 = ssub.s32 %s14, 1
        // Predicated region
        $region13: #{tpu_custom_call.1} parent=11 // pred_check
          %p163 = pneg %p75
        $region14: #{tpu_custom_call.1} parent=11 // pred_check_branch
          %165 = sbr.rel (%p163) target = $region16
        $region15: #{tpu_custom_call.1} parent=11 // pred_region
          _
        $region16: #{tpu_custom_call.1} parent=11 // pred_fallthru
          _
        // Predicated region
        $region17: #{tpu_custom_call.1} parent=11 // pred_check
          %p166 = pneg %p96
        $region18: #{tpu_custom_call.1} parent=11 // pred_check_branch
          %168 = sbr.rel (%p166) target = $region20
        $region19: #{tpu_custom_call.1} parent=11 // pred_region
          _
        $region20: #{tpu_custom_call.1} parent=11 // pred_fallthru
          _
      $region12: #{tpu_custom_call.1} parent=5 // pred_fallthru
        _
      %p169 = scmp.lt.s32.totalorder %s14, 2
      // Predicated region
      $region21: #{tpu_custom_call.1} parent=5 // pred_check
        %p170 = pneg %p169
      $region22: #{tpu_custom_call.1} parent=5 // pred_check_branch
        %172 = sbr.rel (%p170) target = $region24
      $region23: #{tpu_custom_call.1} parent=5 // pred_region
        // Predicated region
        $region25: #{tpu_custom_call.1} parent=23 // pred_check
          %p173 = pneg %p48
        $region26: #{tpu_custom_call.1} parent=23 // pred_check_branch
          %175 = sbr.rel (%p173) target = $region28
        $region27: #{tpu_custom_call.1} parent=23 // pred_region
          %s176 = sand.u32 %s38, 1
          %s177 = scalar_lea.sflag [#allocation3], %s176
          %s178 = sand.u32 %s38, 1
          %s179 = smul.addr %s178, 8
          %s180 = scalar_lea.vmem [#allocation2], %s179
          %s181 = smul.u32 2, %s22
          %s183 = ssub.s32 128, 128
          %184 = vsyncadd %s177, %s183
          %s185 = smul.addr %s21, 2
          %s186 = sadd.s32 %s181, %s185
          %s187 = smul.addr %s186, 64
          %s188 = scalar_lea.hbm %s0, %s187
          %s190 = sshll.u32 %s180, 4
          %s191 = int_to_ptr.vmem [resolvable:$true] %s190
          %193 = dma.hbm_to_vmem [thread:$0]  %s188, 128, %s191, %s177
        $region28: #{tpu_custom_call.1} parent=23 // pred_fallthru
          _
      $region24: #{tpu_custom_call.1} parent=5 // pred_fallthru
        _
      %p194 = scmp.le.s32.totalorder 1, %s14
      %p195 = scmp.lt.s32.totalorder %s14, 3
      %p196 = pnand %p194, %p195
      %p197 = pneg %p196
      // Predicated region
      $region29: #{tpu_custom_call.1} parent=5 // pred_check
        _
      $region30: #{tpu_custom_call.1} parent=5 // pred_check_branch
        %199 = sbr.rel (%p196) target = $region32
      $region31: #{tpu_custom_call.1} parent=5 // pred_region
        %s200 = ssub.s32 %s14, 1
        %s201 = sand.u32 %s41, 1
        %s202 = scalar_lea.sflag [#allocation3], %s201
        %s203 = sand.u32 %s41, 1
        %s204 = smul.addr %s203, 8
        %s205 = scalar_lea.vmem [#allocation2], %s204
        // Predicated region
        $region33: #{tpu_custom_call.1} parent=31 // pred_check
          %p206 = pneg %p54
        $region34: #{tpu_custom_call.1} parent=31 // pred_check_branch
          %208 = sbr.rel (%p206) target = $region36
        $region35: #{tpu_custom_call.1} parent=31 // pred_region
          %209 = dma.done %s202, 128
        $region36: #{tpu_custom_call.1} parent=31 // pred_fallthru
          _
        %s210 = sand.u32 %s41, 1
        %s211 = scalar_lea.sflag [#allocation3], %s210
        %s212 = sand.u32 %s41, 1
        %s213 = smul.addr %s212, 8
        %s214 = scalar_lea.vmem [#allocation2], %s213
        %p215 = pneg %p54
        %p216 = pneg %p51
        %p217 = pneg %p75
        %p218 = pneg %p72
        %p219 = pneg %p96
        %p220 = pneg %p93
        %p221 = pneg %p122
        %p222 = pneg %p119
        %p223 = scmp.lt.s32.totalorder %s23, 1
        %s224 = scalar_select %p223, %s23, 1
        %s225 = scalar_lea.vmem %s3, %s224
        %p226 = pneg %p148
        %p227 = pneg %p145
        %p228 = scmp.lt.s32.totalorder %s23, 1
        %s229 = scalar_select %p228, %s23, 1
        %s230 = scalar_lea.vmem %s4, %s229
        %s231 = smul.u32 2, %s24
        %p232 = scmp.lt.s32.totalorder %s23, 1
        %s233 = scalar_select %p232, %s23, 1
        %s234 = scalar_lea.vmem %s3, %s233
        %p235 = scmp.lt.s32.totalorder %s23, 1
        %s236 = scalar_select %p235, %s23, 1
        %s237 = scalar_lea.vmem %s4, %s236
        %v238 = vld [vmem:[%s1] sm:$0xf]
        %v239 = vld [vmem:[%s205] sm:$0xff]
        %v240 = vld [vmem:[%s2] sm:$0xf]
        %242 = vset.pattern.permute.xlu0 0
        %243 = vperm.xlu0 %242, %v240
        %v244 = vpop.permute.xlu0 %243
        %v247 = vcombine.high %v239, %v239
        %vm248 = vcmask 31744
        %v250 = vsel %vm248, %v238, 0
        %vm252 = vcmask 1043456
        %v253 = vsel %vm252, %v239, 0
        %v255 = vsel %vm252, %v247, 0
        %257 = vmatprep.subr.mxu0 0.0
        %258 = vmatpush1.msra.mxu0 0.0
        %259 = vmatprep.subr.mxu0 0.0
        %260 = vmatpush1.msra.mxu0 0.0
        %261 = vmatprep.subr.mxu0 0.0
        %262 = vmatpush1.msra.mxu0 0.0
        %263 = vmatprep.subr.mxu0 0.0
        %264 = vmatpush1.msra.mxu0 0.0
        %265 = vmatprep.subr.mxu0 0.0
        %266 = vmatpush1.msra.mxu0 0.0
        %267 = vmatprep.subr.mxu0 0.0
        %268 = vmatpush1.msra.mxu0 0.0
        %269 = vmatprep.subr.mxu0 0.0
        %270 = vmatpush1.msra.mxu0 0.0
        %271 = vmatprep.subr.mxu0 0.0
        %272 = vmatpush1.msra.mxu0 0.0
        %273 = vmatprep.subr.mxu0 0.0
        %274 = vmatpush1.msra.mxu0 0.0
        %275 = vmatprep.subr.mxu0 0.0
        %276 = vmatpush1.msra.mxu0 0.0
        %277 = vmatprep.subr.mxu0 0.0
        %278 = vmatpush1.msra.mxu0 0.0
        %279 = vmatprep.subr.mxu0 0.0
        %280 = vmatpush1.msra.mxu0 0.0
        %281 = vmatprep.subr.mxu0 0.0
        %282 = vmatpush1.msra.mxu0 0.0
        %283 = vmatprep.subr.mxu0 0.0
        %284 = vmatpush1.msra.mxu0 0.0
        %285 = vmatprep.subr.mxu0 0.0
        %286 = vmatpush1.msra.mxu0 0.0
        %v287 = vand.u32 %v255, 4294901760
        %288 = vmatprep.subr.mxu0 %v287
        %v289 = vand.u32 %v253, 4294901760
        %290 = vmatpush1.msra.mxu0 %v289
        %291 = vmatprep.subr.mxu0 0.0
        %292 = vmatpush2.msra.mxu0 0.0
        %293 = vmatprep.subr.mxu0 0.0
        %294 = vmatpush2.msra.mxu0 0.0
        %295 = vmatprep.subr.mxu0 0.0
        %296 = vmatpush2.msra.mxu0 0.0
        %297 = vmatprep.subr.mxu0 0.0
        %298 = vmatpush2.msra.mxu0 0.0
        %299 = vmatprep.subr.mxu0 0.0
        %300 = vmatpush2.msra.mxu0 0.0
        %301 = vmatprep.subr.mxu0 0.0
        %302 = vmatpush2.msra.mxu0 0.0
        %303 = vmatprep.subr.mxu0 0.0
        %304 = vmatpush2.msra.mxu0 0.0
        %305 = vmatprep.subr.mxu0 0.0
        %306 = vmatpush2.msra.mxu0 0.0
        %307 = vmatprep.subr.mxu0 0.0
        %308 = vmatpush2.msra.mxu0 0.0
        %309 = vmatprep.subr.mxu0 0.0
        %310 = vmatpush2.msra.mxu0 0.0
        %311 = vmatprep.subr.mxu0 0.0
        %312 = vmatpush2.msra.mxu0 0.0
        %313 = vmatprep.subr.mxu0 0.0
        %314 = vmatpush2.msra.mxu0 0.0
        %315 = vmatprep.subr.mxu0 0.0
        %316 = vmatpush2.msra.mxu0 0.0
        %317 = vmatprep.subr.mxu0 0.0
        %318 = vmatpush2.msra.mxu0 0.0
        %319 = vmatprep.subr.mxu0 0.0
        %320 = vmatpush2.msra.mxu0 0.0
        %321 = vmatprep.subr.mxu0 0.0
        %322 = vmatpush2.msra.mxu0 0.0
        %323 = vmatprep.mubr.f32.mxu0 0.0
        %v324 = vand.u32 %v250, 4294901760
        %v325 = vsub.f32 %v250, %v324
        %v326 = vand.u32 %v325, 4294901760
        %v327 = vsub.f32 %v325, %v326
        %v328 = vand.u32 %v327, 4294901760
        %329 = vmatmul.mubr.f32.gmra.mxu0 %v328
        %v330 = vpop.f32.mrf.mxu0
        %v331 = vadd.f32 %v244, %v330
        %v332 = vpop.f32.mrf.mxu0
        %v333 = vadd.f32 %v244, %v332
        %334 = vdwg.mxu0
        %335 = vmatprep.subr.mxu0 0.0
        %336 = vmatpush1.msra.mxu0 0.0
        %337 = vmatprep.subr.mxu0 0.0
        %338 = vmatpush1.msra.mxu0 0.0
        %339 = vmatprep.subr.mxu0 0.0
        %340 = vmatpush1.msra.mxu0 0.0
        %341 = vmatprep.subr.mxu0 0.0
        %342 = vmatpush1.msra.mxu0 0.0
        %343 = vmatprep.subr.mxu0 0.0
        %344 = vmatpush1.msra.mxu0 0.0
        %345 = vmatprep.subr.mxu0 0.0
        %346 = vmatpush1.msra.mxu0 0.0
        %347 = vmatprep.subr.mxu0 0.0
        %348 = vmatpush1.msra.mxu0 0.0
        %349 = vmatprep.subr.mxu0 0.0
        %350 = vmatpush1.msra.mxu0 0.0
        %351 = vmatprep.subr.mxu0 0.0
        %352 = vmatpush1.msra.mxu0 0.0
        %353 = vmatprep.subr.mxu0 0.0
        %354 = vmatpush1.msra.mxu0 0.0
        %355 = vmatprep.subr.mxu0 0.0
        %356 = vmatpush1.msra.mxu0 0.0
        %357 = vmatprep.subr.mxu0 0.0
        %358 = vmatpush1.msra.mxu0 0.0
        %359 = vmatprep.subr.mxu0 0.0
        %360 = vmatpush1.msra.mxu0 0.0
        %361 = vmatprep.subr.mxu0 0.0
        %362 = vmatpush1.msra.mxu0 0.0
        %363 = vmatprep.subr.mxu0 0.0
        %364 = vmatpush1.msra.mxu0 0.0
        %v365 = vand.u32 %v255, 4294901760
        %v366 = vsub.f32 %v255, %v365
        %v367 = vand.u32 %v366, 4294901760
        %v368 = vsub.f32 %v366, %v367
        %v369 = vand.u32 %v368, 4294901760
        %370 = vmatprep.subr.mxu0 %v369
        %v371 = vand.u32 %v253, 4294901760
        %v372 = vsub.f32 %v253, %v371
        %v373 = vand.u32 %v372, 4294901760
        %v374 = vsub.f32 %v372, %v373
        %v375 = vand.u32 %v374, 4294901760
        %376 = vmatpush1.msra.mxu0 %v375
        %377 = vmatprep.subr.mxu0 0.0
        %378 = vmatpush2.msra.mxu0 0.0
        %379 = vmatprep.subr.mxu0 0.0
        %380 = vmatpush2.msra.mxu0 0.0
        %381 = vmatprep.subr.mxu0 0.0
        %382 = vmatpush2.msra.mxu0 0.0
        %383 = vmatprep.subr.mxu0 0.0
        %384 = vmatpush2.msra.mxu0 0.0
        %385 = vmatprep.subr.mxu0 0.0
        %386 = vmatpush2.msra.mxu0 0.0
        %387 = vmatprep.subr.mxu0 0.0
        %388 = vmatpush2.msra.mxu0 0.0
        %389 = vmatprep.subr.mxu0 0.0
        %390 = vmatpush2.msra.mxu0 0.0
        %391 = vmatprep.subr.mxu0 0.0
        %392 = vmatpush2.msra.mxu0 0.0
        %393 = vmatprep.subr.mxu0 0.0
        %394 = vmatpush2.msra.mxu0 0.0
        %395 = vmatprep.subr.mxu0 0.0
        %396 = vmatpush2.msra.mxu0 0.0
        %397 = vmatprep.subr.mxu0 0.0
        %398 = vmatpush2.msra.mxu0 0.0
        %399 = vmatprep.subr.mxu0 0.0
        %400 = vmatpush2.msra.mxu0 0.0
        %401 = vmatprep.subr.mxu0 0.0
        %402 = vmatpush2.msra.mxu0 0.0
        %403 = vmatprep.subr.mxu0 0.0
        %404 = vmatpush2.msra.mxu0 0.0
        %405 = vmatprep.subr.mxu0 0.0
        %406 = vmatpush2.msra.mxu0 0.0
        %407 = vmatprep.subr.mxu0 0.0
        %408 = vmatpush2.msra.mxu0 0.0
        %409 = vmatprep.mubr.f32.mxu0 0.0
        %v410 = vand.u32 %v250, 4294901760
        %411 = vmatmul.mubr.f32.gmra.mxu0 %v410
        %v412 = vpop.f32.mrf.mxu0
        %v413 = vadd.f32 %v331, %v412
        %v414 = vpop.f32.mrf.mxu0
        %v415 = vadd.f32 %v333, %v414
        %416 = vdwg.mxu0
        %417 = vmatprep.subr.mxu0 0.0
        %418 = vmatpush1.msra.mxu0 0.0
        %419 = vmatprep.subr.mxu0 0.0
        %420 = vmatpush1.msra.mxu0 0.0
        %421 = vmatprep.subr.mxu0 0.0
        %422 = vmatpush1.msra.mxu0 0.0
        %423 = vmatprep.subr.mxu0 0.0
        %424 = vmatpush1.msra.mxu0 0.0
        %425 = vmatprep.subr.mxu0 0.0
        %426 = vmatpush1.msra.mxu0 0.0
        %427 = vmatprep.subr.mxu0 0.0
        %428 = vmatpush1.msra.mxu0 0.0
        %429 = vmatprep.subr.mxu0 0.0
        %430 = vmatpush1.msra.mxu0 0.0
        %431 = vmatprep.subr.mxu0 0.0
        %432 = vmatpush1.msra.mxu0 0.0
        %433 = vmatprep.subr.mxu0 0.0
        %434 = vmatpush1.msra.mxu0 0.0
        %435 = vmatprep.subr.mxu0 0.0
        %436 = vmatpush1.msra.mxu0 0.0
        %437 = vmatprep.subr.mxu0 0.0
        %438 = vmatpush1.msra.mxu0 0.0
        %439 = vmatprep.subr.mxu0 0.0
        %440 = vmatpush1.msra.mxu0 0.0
        %441 = vmatprep.subr.mxu0 0.0
        %442 = vmatpush1.msra.mxu0 0.0
        %443 = vmatprep.subr.mxu0 0.0
        %444 = vmatpush1.msra.mxu0 0.0
        %445 = vmatprep.subr.mxu0 0.0
        %446 = vmatpush1.msra.mxu0 0.0
        %v447 = vand.u32 %v255, 4294901760
        %v448 = vsub.f32 %v255, %v447
        %449 = vmatprep.subr.mxu0 %v448
        %v450 = vand.u32 %v253, 4294901760
        %v451 = vsub.f32 %v253, %v450
        %452 = vmatpush1.msra.mxu0 %v451
        %453 = vmatprep.subr.mxu0 0.0
        %454 = vmatpush2.msra.mxu0 0.0
        %455 = vmatprep.subr.mxu0 0.0
        %456 = vmatpush2.msra.mxu0 0.0
        %457 = vmatprep.subr.mxu0 0.0
        %458 = vmatpush2.msra.mxu0 0.0
        %459 = vmatprep.subr.mxu0 0.0
        %460 = vmatpush2.msra.mxu0 0.0
        %461 = vmatprep.subr.mxu0 0.0
        %462 = vmatpush2.msra.mxu0 0.0
        %463 = vmatprep.subr.mxu0 0.0
        %464 = vmatpush2.msra.mxu0 0.0
        %465 = vmatprep.subr.mxu0 0.0
        %466 = vmatpush2.msra.mxu0 0.0
        %467 = vmatprep.subr.mxu0 0.0
        %468 = vmatpush2.msra.mxu0 0.0
        %469 = vmatprep.subr.mxu0 0.0
        %470 = vmatpush2.msra.mxu0 0.0
        %471 = vmatprep.subr.mxu0 0.0
        %472 = vmatpush2.msra.mxu0 0.0
        %473 = vmatprep.subr.mxu0 0.0
        %474 = vmatpush2.msra.mxu0 0.0
        %475 = vmatprep.subr.mxu0 0.0
        %476 = vmatpush2.msra.mxu0 0.0
        %477 = vmatprep.subr.mxu0 0.0
        %478 = vmatpush2.msra.mxu0 0.0
        %479 = vmatprep.subr.mxu0 0.0
        %480 = vmatpush2.msra.mxu0 0.0
        %481 = vmatprep.subr.mxu0 0.0
        %482 = vmatpush2.msra.mxu0 0.0
        %483 = vmatprep.subr.mxu0 0.0
        %484 = vmatpush2.msra.mxu0 0.0
        %485 = vmatprep.mubr.f32.mxu0 0.0
        %v486 = vand.u32 %v250, 4294901760
        %v487 = vsub.f32 %v250, %v486
        %488 = vmatmul.mubr.f32.gmra.mxu0 %v487
        %v489 = vpop.f32.mrf.mxu0
        %v490 = vadd.f32 %v413, %v489
        %v491 = vpop.f32.mrf.mxu0
        %v492 = vadd.f32 %v415, %v491
        %493 = vdwg.mxu0
        %494 = vmatprep.subr.mxu0 0.0
        %495 = vmatpush1.msra.mxu0 0.0
        %496 = vmatprep.subr.mxu0 0.0
        %497 = vmatpush1.msra.mxu0 0.0
        %498 = vmatprep.subr.mxu0 0.0
        %499 = vmatpush1.msra.mxu0 0.0
        %500 = vmatprep.subr.mxu0 0.0
        %501 = vmatpush1.msra.mxu0 0.0
        %502 = vmatprep.subr.mxu0 0.0
        %503 = vmatpush1.msra.mxu0 0.0
        %504 = vmatprep.subr.mxu0 0.0
        %505 = vmatpush1.msra.mxu0 0.0
        %506 = vmatprep.subr.mxu0 0.0
        %507 = vmatpush1.msra.mxu0 0.0
        %508 = vmatprep.subr.mxu0 0.0
        %509 = vmatpush1.msra.mxu0 0.0
        %510 = vmatprep.subr.mxu0 0.0
        %511 = vmatpush1.msra.mxu0 0.0
        %512 = vmatprep.subr.mxu0 0.0
        %513 = vmatpush1.msra.mxu0 0.0
        %514 = vmatprep.subr.mxu0 0.0
        %515 = vmatpush1.msra.mxu0 0.0
        %516 = vmatprep.subr.mxu0 0.0
        %517 = vmatpush1.msra.mxu0 0.0
        %518 = vmatprep.subr.mxu0 0.0
        %519 = vmatpush1.msra.mxu0 0.0
        %520 = vmatprep.subr.mxu0 0.0
        %521 = vmatpush1.msra.mxu0 0.0
        %522 = vmatprep.subr.mxu0 0.0
        %523 = vmatpush1.msra.mxu0 0.0
        %v524 = vand.u32 %v255, 4294901760
        %525 = vmatprep.subr.mxu0 %v524
        %v526 = vand.u32 %v253, 4294901760
        %527 = vmatpush1.msra.mxu0 %v526
        %528 = vmatprep.subr.mxu0 0.0
        %529 = vmatpush2.msra.mxu0 0.0
        %530 = vmatprep.subr.mxu0 0.0
        %531 = vmatpush2.msra.mxu0 0.0
        %532 = vmatprep.subr.mxu0 0.0
        %533 = vmatpush2.msra.mxu0 0.0
        %534 = vmatprep.subr.mxu0 0.0
        %535 = vmatpush2.msra.mxu0 0.0
        %536 = vmatprep.subr.mxu0 0.0
        %537 = vmatpush2.msra.mxu0 0.0
        %538 = vmatprep.subr.mxu0 0.0
        %539 = vmatpush2.msra.mxu0 0.0
        %540 = vmatprep.subr.mxu0 0.0
        %541 = vmatpush2.msra.mxu0 0.0
        %542 = vmatprep.subr.mxu0 0.0
        %543 = vmatpush2.msra.mxu0 0.0
        %544 = vmatprep.subr.mxu0 0.0
        %545 = vmatpush2.msra.mxu0 0.0
        %546 = vmatprep.subr.mxu0 0.0
        %547 = vmatpush2.msra.mxu0 0.0
        %548 = vmatprep.subr.mxu0 0.0
        %549 = vmatpush2.msra.mxu0 0.0
        %550 = vmatprep.subr.mxu0 0.0
        %551 = vmatpush2.msra.mxu0 0.0
        %552 = vmatprep.subr.mxu0 0.0
        %553 = vmatpush2.msra.mxu0 0.0
        %554 = vmatprep.subr.mxu0 0.0
        %555 = vmatpush2.msra.mxu0 0.0
        %556 = vmatprep.subr.mxu0 0.0
        %557 = vmatpush2.msra.mxu0 0.0
        %558 = vmatprep.subr.mxu0 0.0
        %559 = vmatpush2.msra.mxu0 0.0
        %560 = vmatprep.mubr.f32.mxu0 0.0
        %v561 = vand.u32 %v250, 4294901760
        %v562 = vsub.f32 %v250, %v561
        %v563 = vand.u32 %v562, 4294901760
        %564 = vmatmul.mubr.f32.gmra.mxu0 %v563
        %v565 = vpop.f32.mrf.mxu0
        %v566 = vadd.f32 %v490, %v565
        %v567 = vpop.f32.mrf.mxu0
        %v568 = vadd.f32 %v492, %v567
        %569 = vdwg.mxu0
        %570 = vmatprep.subr.mxu0 0.0
        %571 = vmatpush1.msra.mxu0 0.0
        %572 = vmatprep.subr.mxu0 0.0
        %573 = vmatpush1.msra.mxu0 0.0
        %574 = vmatprep.subr.mxu0 0.0
        %575 = vmatpush1.msra.mxu0 0.0
        %576 = vmatprep.subr.mxu0 0.0
        %577 = vmatpush1.msra.mxu0 0.0
        %578 = vmatprep.subr.mxu0 0.0
        %579 = vmatpush1.msra.mxu0 0.0
        %580 = vmatprep.subr.mxu0 0.0
        %581 = vmatpush1.msra.mxu0 0.0
        %582 = vmatprep.subr.mxu0 0.0
        %583 = vmatpush1.msra.mxu0 0.0
        %584 = vmatprep.subr.mxu0 0.0
        %585 = vmatpush1.msra.mxu0 0.0
        %586 = vmatprep.subr.mxu0 0.0
        %587 = vmatpush1.msra.mxu0 0.0
        %588 = vmatprep.subr.mxu0 0.0
        %589 = vmatpush1.msra.mxu0 0.0
        %590 = vmatprep.subr.mxu0 0.0
        %591 = vmatpush1.msra.mxu0 0.0
        %592 = vmatprep.subr.mxu0 0.0
        %593 = vmatpush1.msra.mxu0 0.0
        %594 = vmatprep.subr.mxu0 0.0
        %595 = vmatpush1.msra.mxu0 0.0
        %596 = vmatprep.subr.mxu0 0.0
        %597 = vmatpush1.msra.mxu0 0.0
        %598 = vmatprep.subr.mxu0 0.0
        %599 = vmatpush1.msra.mxu0 0.0
        %v600 = vand.u32 %v255, 4294901760
        %v601 = vsub.f32 %v255, %v600
        %v602 = vand.u32 %v601, 4294901760
        %603 = vmatprep.subr.mxu0 %v602
        %v604 = vand.u32 %v253, 4294901760
        %v605 = vsub.f32 %v253, %v604
        %v606 = vand.u32 %v605, 4294901760
        %607 = vmatpush1.msra.mxu0 %v606
        %608 = vmatprep.subr.mxu0 0.0
        %609 = vmatpush2.msra.mxu0 0.0
        %610 = vmatprep.subr.mxu0 0.0
        %611 = vmatpush2.msra.mxu0 0.0
        %612 = vmatprep.subr.mxu0 0.0
        %613 = vmatpush2.msra.mxu0 0.0
        %614 = vmatprep.subr.mxu0 0.0
        %615 = vmatpush2.msra.mxu0 0.0
        %616 = vmatprep.subr.mxu0 0.0
        %617 = vmatpush2.msra.mxu0 0.0
        %618 = vmatprep.subr.mxu0 0.0
        %619 = vmatpush2.msra.mxu0 0.0
        %620 = vmatprep.subr.mxu0 0.0
        %621 = vmatpush2.msra.mxu0 0.0
        %622 = vmatprep.subr.mxu0 0.0
        %623 = vmatpush2.msra.mxu0 0.0
        %624 = vmatprep.subr.mxu0 0.0
        %625 = vmatpush2.msra.mxu0 0.0
        %626 = vmatprep.subr.mxu0 0.0
        %627 = vmatpush2.msra.mxu0 0.0
        %628 = vmatprep.subr.mxu0 0.0
        %629 = vmatpush2.msra.mxu0 0.0
        %630 = vmatprep.subr.mxu0 0.0
        %631 = vmatpush2.msra.mxu0 0.0
        %632 = vmatprep.subr.mxu0 0.0
        %633 = vmatpush2.msra.mxu0 0.0
        %634 = vmatprep.subr.mxu0 0.0
        %635 = vmatpush2.msra.mxu0 0.0
        %636 = vmatprep.subr.mxu0 0.0
        %637 = vmatpush2.msra.mxu0 0.0
        %638 = vmatprep.subr.mxu0 0.0
        %639 = vmatpush2.msra.mxu0 0.0
        %640 = vmatprep.mubr.f32.mxu0 0.0
        %v641 = vand.u32 %v250, 4294901760
        %642 = vmatmul.mubr.f32.gmra.mxu0 %v641
        %v643 = vpop.f32.mrf.mxu0
        %v644 = vadd.f32 %v566, %v643
        %v645 = vpop.f32.mrf.mxu0
        %v646 = vadd.f32 %v568, %v645
        %647 = vdwg.mxu0
        %648 = vmatprep.subr.mxu0 0.0
        %649 = vmatpush1.msra.mxu0 0.0
        %650 = vmatprep.subr.mxu0 0.0
        %651 = vmatpush1.msra.mxu0 0.0
        %652 = vmatprep.subr.mxu0 0.0
        %653 = vmatpush1.msra.mxu0 0.0
        %654 = vmatprep.subr.mxu0 0.0
        %655 = vmatpush1.msra.mxu0 0.0
        %656 = vmatprep.subr.mxu0 0.0
        %657 = vmatpush1.msra.mxu0 0.0
        %658 = vmatprep.subr.mxu0 0.0
        %659 = vmatpush1.msra.mxu0 0.0
        %660 = vmatprep.subr.mxu0 0.0
        %661 = vmatpush1.msra.mxu0 0.0
        %662 = vmatprep.subr.mxu0 0.0
        %663 = vmatpush1.msra.mxu0 0.0
        %664 = vmatprep.subr.mxu0 0.0
        %665 = vmatpush1.msra.mxu0 0.0
        %666 = vmatprep.subr.mxu0 0.0
        %667 = vmatpush1.msra.mxu0 0.0
        %668 = vmatprep.subr.mxu0 0.0
        %669 = vmatpush1.msra.mxu0 0.0
        %670 = vmatprep.subr.mxu0 0.0
        %671 = vmatpush1.msra.mxu0 0.0
        %672 = vmatprep.subr.mxu0 0.0
        %673 = vmatpush1.msra.mxu0 0.0
        %674 = vmatprep.subr.mxu0 0.0
        %675 = vmatpush1.msra.mxu0 0.0
        %676 = vmatprep.subr.mxu0 0.0
        %677 = vmatpush1.msra.mxu0 0.0
        %v678 = vand.u32 %v255, 4294901760
        %679 = vmatprep.subr.mxu0 %v678
        %v680 = vand.u32 %v253, 4294901760
        %681 = vmatpush1.msra.mxu0 %v680
        %682 = vmatprep.subr.mxu0 0.0
        %683 = vmatpush2.msra.mxu0 0.0
        %684 = vmatprep.subr.mxu0 0.0
        %685 = vmatpush2.msra.mxu0 0.0
        %686 = vmatprep.subr.mxu0 0.0
        %687 = vmatpush2.msra.mxu0 0.0
        %688 = vmatprep.subr.mxu0 0.0
        %689 = vmatpush2.msra.mxu0 0.0
        %690 = vmatprep.subr.mxu0 0.0
        %691 = vmatpush2.msra.mxu0 0.0
        %692 = vmatprep.subr.mxu0 0.0
        %693 = vmatpush2.msra.mxu0 0.0
        %694 = vmatprep.subr.mxu0 0.0
        %695 = vmatpush2.msra.mxu0 0.0
        %696 = vmatprep.subr.mxu0 0.0
        %697 = vmatpush2.msra.mxu0 0.0
        %698 = vmatprep.subr.mxu0 0.0
        %699 = vmatpush2.msra.mxu0 0.0
        %700 = vmatprep.subr.mxu0 0.0
        %701 = vmatpush2.msra.mxu0 0.0
        %702 = vmatprep.subr.mxu0 0.0
        %703 = vmatpush2.msra.mxu0 0.0
        %704 = vmatprep.subr.mxu0 0.0
        %705 = vmatpush2.msra.mxu0 0.0
        %706 = vmatprep.subr.mxu0 0.0
        %707 = vmatpush2.msra.mxu0 0.0
        %708 = vmatprep.subr.mxu0 0.0
        %709 = vmatpush2.msra.mxu0 0.0
        %710 = vmatprep.subr.mxu0 0.0
        %711 = vmatpush2.msra.mxu0 0.0
        %712 = vmatprep.subr.mxu0 0.0
        %713 = vmatpush2.msra.mxu0 0.0
        %714 = vmatprep.mubr.f32.mxu0 0.0
        %v715 = vand.u32 %v250, 4294901760
        %716 = vmatmul.mubr.f32.gmra.mxu0 %v715
        %v717 = vpop.f32.mrf.mxu0
        %v718 = vadd.f32 %v644, %v717
        %v719 = vpop.f32.mrf.mxu0
        %v720 = vadd.f32 %v646, %v719
        %721 = vdwg.mxu0
        %v722 = vsel %vm252, %v718, inf
        %v723 = vsel %vm252, %v720, inf
        %v724 = vmin.f32 %v722, %v723
        %725 = vmin.xlane.f32.xlu0 %v724
        %v726 = vpop.xlane.xlu0 %725
        %v727 = vrot.slane %v726, 4
        %v728 = vmin.f32 %v726, %v727
        %v729 = vrot.slane %v728, 2
        %v730 = vmin.f32 %v728, %v729
        %v731 = vrot.slane %v730, 1
        %v732 = vmin.f32 %v730, %v731
        %s733 = vtos %v732
        %v734 = vstv %s733
        %v735 = vsel %vm252, %v718, -inf
        %v736 = vsel %vm252, %v720, -inf
        %v737 = vmax.f32 %v735, %v736
        %738 = vmax.xlane.f32.xlu0 %v737
        %v739 = vpop.xlane.xlu0 %738
        %v740 = vrot.slane %v739, 4
        %v741 = vmax.f32 %v739, %v740
        %v742 = vrot.slane %v741, 2
        %v743 = vmax.f32 %v741, %v742
        %v744 = vrot.slane %v743, 1
        %v745 = vmax.f32 %v743, %v744
        %s746 = vtos %v745
        %v747 = vstv %s746
        %p748 = scmp.eq.s32.totalorder %s24, 0
        // Predicated region
        $region37: #{tpu_custom_call.1} parent=31 // pred_check
          %p749 = pneg %p748
        $region38: #{tpu_custom_call.1} parent=31 // pred_check_branch
          %751 = sbr.rel (%p749) target = $region40
        $region39: #{tpu_custom_call.1} parent=31 // pred_region
          %vm752 = vcmask 0
          %753 = vst.msk [vmem:[%s234] sm:$0x1] %vm752, %v734
          %754 = vst.msk [vmem:[%s237] sm:$0x1] %vm752, %v747
        $region40: #{tpu_custom_call.1} parent=31 // pred_fallthru
          _
        %p755 = scmp.ne.s32.totalorder %s24, 0
        // Predicated region
        $region41: #{tpu_custom_call.1} parent=31 // pred_check
          %p756 = pneg %p755
        $region42: #{tpu_custom_call.1} parent=31 // pred_check_branch
          %758 = sbr.rel (%p756) target = $region44
        $region43: #{tpu_custom_call.1} parent=31 // pred_region
          %v759 = vld [vmem:[%s234] sm:$0x1]
          %v760 = vmin.f32 %v759, %v734
          %vm761 = vcmask 0
          %762 = vst.msk [vmem:[%s234] sm:$0x1] %vm761, %v760
          %v763 = vld [vmem:[%s237] sm:$0x1]
          %v764 = vmax.f32 %v763, %v747
          %765 = vst.msk [vmem:[%s237] sm:$0x1] %vm761, %v764
        $region44: #{tpu_custom_call.1} parent=31 // pred_fallthru
          _
        %p766 = scmp.lt.s32.totalorder %s23, 1
        %s767 = scalar_select %p766, %s23, 1
        %s768 = scalar_lea.vmem %s3, %s767
        %p769 = scmp.lt.s32.totalorder %s23, 1
        %s770 = scalar_select %p769, %s23, 1
        %s771 = scalar_lea.vmem %s4, %s770
        // Predicated region
        $region45: #{tpu_custom_call.1} parent=31 // pred_check
          %p772 = pneg %p119
        $region46: #{tpu_custom_call.1} parent=31 // pred_check_branch
          %774 = sbr.rel (%p772) target = $region48
        $region47: #{tpu_custom_call.1} parent=31 // pred_region
          _
        $region48: #{tpu_custom_call.1} parent=31 // pred_fallthru
          _
        // Predicated region
        $region49: #{tpu_custom_call.1} parent=31 // pred_check
          %p775 = pneg %p145
        $region50: #{tpu_custom_call.1} parent=31 // pred_check_branch
          %777 = sbr.rel (%p775) target = $region52
        $region51: #{tpu_custom_call.1} parent=31 // pred_region
          _
        $region52: #{tpu_custom_call.1} parent=31 // pred_fallthru
          _
      $region32: #{tpu_custom_call.1} parent=5 // pred_fallthru
        _
      %p778 = scmp.le.s32.totalorder 2, %s14
      // Predicated region
      $region53: #{tpu_custom_call.1} parent=5 // pred_check
        %p779 = pneg %p778
      $region54: #{tpu_custom_call.1} parent=5 // pred_check_branch
        %781 = sbr.rel (%p779) target = $region56
      $region55: #{tpu_custom_call.1} parent=5 // pred_region
        %s782 = ssub.s32 %s14, 2
        // Predicated region
        $region57: #{tpu_custom_call.1} parent=55 // pred_check
          %p783 = pneg %p125
        $region58: #{tpu_custom_call.1} parent=55 // pred_check_branch
          %785 = sbr.rel (%p783) target = $region60
        $region59: #{tpu_custom_call.1} parent=55 // pred_region
          %p786 = scmp.lt.s32.totalorder %s25, 1
          %s787 = scalar_select %p786, %s25, 1
          %s788 = scalar_lea.vmem %s3, %s787
        $region60: #{tpu_custom_call.1} parent=55 // pred_fallthru
          _
        // Predicated region
        $region61: #{tpu_custom_call.1} parent=55 // pred_check
          %p789 = pneg %p151
        $region62: #{tpu_custom_call.1} parent=55 // pred_check_branch
          %791 = sbr.rel (%p789) target = $region64
        $region63: #{tpu_custom_call.1} parent=55 // pred_region
          %p792 = scmp.lt.s32.totalorder %s25, 1
          %s793 = scalar_select %p792, %s25, 1
          %s794 = scalar_lea.vmem %s4, %s793
        $region64: #{tpu_custom_call.1} parent=55 // pred_fallthru
          _
      $region56: #{tpu_custom_call.1} parent=5 // pred_fallthru
        _
    $region6: #{tpu_custom_call.1} parent=1 // loop_footer
      %s18 = sadd.s32 1, %s14
    $region7: #{tpu_custom_call.1} parent=1 // loop_footer_branch
      %13 = sbr.rel target = $region3
    $region8: #{tpu_custom_call.1} parent=1 // loop_exit
      _
    %795 = vsyncpa [#allocation3], 1
    %s796 = scalar_lea.sflag [#allocation3], 1
    %797 = vsyncpa %s796, 1

</llo_original>
